<compile_context>
chip_gen: v6e
topology: v6e:2x2x1
jax: 0.10.0
libtpu: 0.0.40
codegen_flags: <defaults>
</compile_context>

<pallas_src>
import functools

import jax
import jax.numpy as jnp
from jax.experimental import pallas as pl
from jax.experimental.pallas import tpu as pltpu


# --------------------------------------------------------------------------- #
# Kernel
# --------------------------------------------------------------------------- #
def _attention_kernel(*refs, has_mask, approx_recip):
    # refs: x (TB,S,F), w (1,1,F) f32, b (1,S) f32, [mask (TB,S)], out (TB,F)
    if has_mask:
        x_ref, w_ref, b_ref, m_ref, o_ref = refs
    else:
        x_ref, w_ref, b_ref, o_ref = refs
        m_ref = None

    w = w_ref[...]                                             # (1, 1, F) f32

    # Scores: lane-dense broadcast multiply (VPU) + lane reduce (XLU) instead
    # of an N=1 MXU matmul.  x is cast per-consumer so the cast fuses into the
    # elementwise ops and no full f32 copy of the tile is materialised in VMEM
    # (matters for bf16 streaming and for v7x's 64 MiB VMEM).
    eij = jnp.sum(x_ref[...].astype(jnp.float32) * w, axis=-1)  # (TB, S)
    eij = eij + b_ref[...]                                      # (1,S) bcast
    a = jnp.exp(jnp.tanh(eij))                                  # EUP

    if m_ref is not None:
        a = a * m_ref[...].astype(jnp.float32)      # narrow-dtype mask stream

    denom = jnp.sum(a, axis=-1, keepdims=True)                  # (TB, 1)
    # NOTE: +1e-10 AFTER the division, exactly as in the PyTorch code.  An
    # all-zero mask row therefore still yields inf/NaN (same as PyTorch).
    if approx_recip:
        a = a * pl.reciprocal(denom, approx=True) + 1e-10       # EUP vrcp
    else:
        a = a / denom + 1e-10

    # Weighted sum over the step dim -> lane-dense (TB, F) output tile.
    # On a partial trailing batch tile the padded rows may be inf/NaN; Pallas
    # clips the writeback to the real rows so they never reach HBM.
    out = jnp.sum(x_ref[...].astype(jnp.float32) * a[:, :, None], axis=1)
    o_ref[...] = out.astype(o_ref.dtype)


# --------------------------------------------------------------------------- #
# Tiling / target helpers
# --------------------------------------------------------------------------- #
def _sublane_multiple(itemsize):
    # (8,128) tiling scales with packing: f32 -> 8, bf16 -> 16, int8/bool -> 32.
    return max(8, 32 // max(int(itemsize), 1))


def _x_tile_budget_bytes():
    """Per-step x-tile budget, derived from the chip's VMEM capacity."""
    try:
        cap = int(pltpu.get_tpu_info().vmem_capacity_bytes)
    except Exception:
        cap = 64 * 1024 * 1024        # conservative default (v7x per-TC)
    # >=1 MiB tiles already reach ~85% of HBM roofline (per-step overhead is
    # only ~0.35 us); keep double-buffered x + in-kernel temporaries well
    # inside the 32 MiB scoped limit, with extra slack on v7x (64 MiB phys).
    return 2 * 1024 * 1024 if cap >= 96 * 1024 * 1024 else (3 * 1024 * 1024) // 2


def _pick_batch_tile(B, S, F, x_itemsize, mask_itemsize, out_itemsize, align,
                     *, max_tile=256, min_grid_steps=4):
    """Batch tile that caps the x slab at ~1.5-2 MiB and keeps >=4 grid steps."""
    per_row = S * F * x_itemsize + S * mask_itemsize + F * out_itemsize
    tb = max(1, _x_tile_budget_bytes() // max(per_row, 1))
    tb = min(tb, max_tile)
    if B >= min_grid_steps * align:
        # Always leave enough grid steps for double-buffering to overlap the
        # HBM stream with compute (grid=(1,) would serialize DMA and VPU).
        tb = min(tb, -(-B // min_grid_steps))
    return tb


def _default_dim_semantics():
    """CORE_PARALLEL on v7x (2 TCs share the batch grid); 'parallel' elsewhere."""
    core_parallel = getattr(pltpu, "CORE_PARALLEL", None)
    try:
        kind = jax.devices()[0].device_kind.lower()
    except Exception:
        kind = ""
    if core_parallel is not None and any(t in kind for t in ("v7", "tpu7", "7x")):
        return (core_parallel,)
    return ("parallel",)


# --------------------------------------------------------------------------- #
# Wrapper
# --------------------------------------------------------------------------- #
def attention_forward(x, weight, bias, mask=None, *, batch_tile=None,
                      approx_recip=True, dimension_semantics=None):
    """Attention forward.

    x: (B, S, F).  Prefer streaming x in bf16 straight from the producer
       (e.g. the LSTM) - the kernel is HBM-bound, so halving x bytes is the
       biggest lever; never cast f32->bf16 in a wrapper just for this kernel.
    weight: (F, 1) f32, bias: (S,) f32.
    mask: (B, S) in any narrow dtype (f32/bf16/int8/bool) or None.
    Output: (B, F) in x.dtype; all in-kernel math is f32.
    """
    B, S, F = x.shape
    w3 = weight.reshape(1, 1, F).astype(jnp.float32)   # lane-dense weight
    b2 = bias.reshape(1, S).astype(jnp.float32)

    if mask is not None and mask.dtype == jnp.bool_:
        mask = mask.astype(jnp.int8)   # i1 blocks are awkward; i8 = same bytes

    out_dtype = x.dtype
    mask_itemsize = int(mask.dtype.itemsize) if mask is not None else 0
    align = _sublane_multiple(out_dtype.itemsize)
    if mask is not None:
        align = max(align, _sublane_multiple(mask_itemsize))

    if batch_tile is None:
        tb = _pick_batch_tile(B, S, F, int(x.dtype.itemsize), mask_itemsize,
                              int(out_dtype.itemsize), align)
    else:
        tb = int(batch_tile)
    if tb < B:
        # Blocked (tb, F) / (tb, S) tiles need a sublane-aligned leading dim
        # for the blocked dtypes (8 f32 / 16 bf16 / 32 int8).
        tb = max(align, ((tb + align - 1) // align) * align)
    if tb >= B:
        tb = B
    grid = (pl.cdiv(B, tb),)

    in_specs = [
        pl.BlockSpec((tb, S, F), lambda i: (i, 0, 0)),   # x: streamed per tile
        pl.BlockSpec((1, 1, F), lambda i: (0, 0, 0)),    # weight: resident
        pl.BlockSpec((1, S), lambda i: (0, 0)),          # bias: resident
    ]
    args = [x, w3, b2]
    if mask is not None:                                 # narrow dtype, no cast
        in_specs.append(pl.BlockSpec((tb, S), lambda i: (i, 0)))
        args.append(mask)

    itemsize = int(x.dtype.itemsize)
    cost = pl.CostEstimate(
        flops=4 * B * S * F,
        transcendentals=2 * B * S,
        bytes_accessed=(B * S * F * itemsize + B * F * itemsize
                        + B * S * mask_itemsize + 4 * (F + S)),
    )

    kernel = functools.partial(_attention_kernel,
                               has_mask=mask is not None,
                               approx_recip=approx_recip)
    dims = (dimension_semantics if dimension_semantics is not None
            else _default_dim_semantics())

    return pl.pallas_call(
        kernel,
        out_shape=jax.ShapeDtypeStruct((B, F), out_dtype),
        grid_spec=pltpu.PrefetchScalarGridSpec(
            num_scalar_prefetch=0,
            grid=grid,
            in_specs=in_specs,
            out_specs=pl.BlockSpec((tb, F), lambda i: (i, 0)),
        ),
        compiler_params=pltpu.CompilerParams(
            dimension_semantics=dims,                # batch tiles independent
            vmem_limit_bytes=32 * 1024 * 1024,       # bump v5e's 16 MiB default
        ),
        cost_estimate=cost,
    )(*args)


# --------------------------------------------------------------------------- #
# Parameter init + pure-JAX reference
# --------------------------------------------------------------------------- #
def init_params(key, feature_dim, step_dim):
    # xavier_uniform_ on torch.zeros(feature_dim, 1):
    # fan_in = 1, fan_out = feature_dim -> bound = sqrt(6 / (1 + feature_dim))
    bound = (6.0 / (1.0 + feature_dim)) ** 0.5
    weight = jax.random.uniform(
        key, (feature_dim, 1), minval=-bound, maxval=bound, dtype=jnp.float32)
    bias = jnp.zeros((step_dim,), dtype=jnp.float32)    # self.b init = zeros
    return weight, bias


def reference_forward(x, weight, bias, mask=None):
    """Pure-JAX reference mirroring the PyTorch forward, for verification."""
    B, S, F = x.shape
    eij = (x.reshape(-1, F) @ weight).reshape(-1, S)
    eij = eij + bias[None, :]
    eij = jnp.tanh(eij)
    a = jnp.exp(eij)
    if mask is not None:
        a = a * mask.astype(x.dtype)
    a = a / jnp.sum(a, axis=1, keepdims=True) + 1e-10
    return jnp.sum(x * a[:, :, None], axis=1)


# --------------------------------------------------------------------------- #
# Self-test
# --------------------------------------------------------------------------- #
if __name__ == "__main__":
    key = jax.random.PRNGKey(0)
    k_x, k_w, k_m, k_x2, k_m2, k_x3 = jax.random.split(key, 6)

    # --- case 1: small shapes consistent with the module, exact math path ---
    B, S, F = 2, 8, 32          # batch, step_dim, feature_dim
    x = jax.random.normal(k_x, (B, S, F), dtype=jnp.float32)
    weight, bias = init_params(k_w, F, S)
    mask = (jax.random.uniform(k_m, (B, S)) > 0.3).astype(jnp.float32)
    mask = mask.at[:, 0].set(1.0)        # guarantee no all-zero row (NaN-free)

    out = jax.block_until_ready(
        attention_forward(x, weight, bias, mask, approx_recip=False))
    ref = reference_forward(x, weight, bias, mask)
    assert out.shape == (B, F)
    assert jnp.allclose(out, ref, atol=1e-4, rtol=1e-4), "mismatch vs reference"

    # --- case 2: mask=None path, default approx reciprocal (EUP) ---
    out_nm = jax.block_until_ready(attention_forward(x, weight, bias, None))
    ref_nm = reference_forward(x, weight, bias, None)
    assert jnp.allclose(out_nm, ref_nm, atol=2e-2, rtol=2e-2)

    # --- case 3: batch-tiled grid with partial trailing tile + bf16 mask ---
    B2, S2, F2 = 20, 16, 128
    x2 = jax.random.normal(k_x2, (B2, S2, F2), dtype=jnp.float32)
    w2, b2p = init_params(k_w, F2, S2)
    m2 = (jax.random.uniform(k_m2, (B2, S2)) > 0.3).astype(jnp.bfloat16)
    m2 = m2.at[:, 0].set(1)
    out2 = jax.block_until_ready(
        attention_forward(x2, w2, b2p, m2, batch_tile=8, approx_recip=False))
    ref2 = reference_forward(x2, w2, b2p, m2.astype(jnp.float32))
    assert jnp.allclose(out2, ref2, atol=1e-4, rtol=1e-4)

    # --- case 4: bf16 streaming of x (HBM-bytes lever), tiled grid, f32 math --
    B3, S3, F3 = 32, 16, 128
    x3 = jax.random.normal(
        k_x3, (B3, S3, F3), dtype=jnp.float32).astype(jnp.bfloat16)
    w3p, b3p = init_params(k_w, F3, S3)
    out3 = jax.block_until_ready(
        attention_forward(x3, w3p, b3p, None, batch_tile=16))
    ref3 = reference_forward(x3.astype(jnp.float32), w3p, b3p, None)
    assert out3.dtype == jnp.bfloat16
    assert jnp.allclose(out3.astype(jnp.float32), ref3, atol=3e-2, rtol=3e-2)

    print("KERNEL_OK")
</pallas_src>

<mosaic_0001>
module attributes {stable_mosaic.version = 11 : i64} {
  func.func @_attention_kernel(%arg0: i32, %arg1: memref<2x8x32xf32, #tpu.memory_space<vmem>>, %arg2: memref<1x1x32xf32, #tpu.memory_space<vmem>>, %arg3: memref<1x8xf32, #tpu.memory_space<vmem>>, %arg4: memref<2x8xf32, #tpu.memory_space<vmem>>, %arg5: memref<2x32xf32, #tpu.memory_space<vmem>>) attributes {dimension_semantics = [#tpu.dimension_semantics<parallel>], iteration_bounds = array<i64: 1>, scalar_prefetch = 0 : i64, scratch_operands = 0 : i64, tpu.core_type = #tpu.core_type<tc>, window_params = [{transform_indices = @transform_0, window_bounds = array<i64: 2, 8, 32>}, {pipeline_mode = #tpu.pipeline_mode<synchronous>, transform_indices = @transform_1, window_bounds = array<i64: 1, 1, 32>}, {pipeline_mode = #tpu.pipeline_mode<synchronous>, transform_indices = @transform_2, window_bounds = array<i64: 1, 8>}, {transform_indices = @transform_3, window_bounds = array<i64: 2, 8>}, {transform_indices = @transform_4, window_bounds = array<i64: 2, 32>}]} {
    %c0 = arith.constant 0 : index
    %c0_0 = arith.constant 0 : index
    %c0_1 = arith.constant 0 : index
    %0 = vector.load %arg2[%c0, %c0_0, %c0_1] : memref<1x1x32xf32, #tpu.memory_space<vmem>>, vector<1x1x32xf32>
    %c0_2 = arith.constant 0 : index
    %c0_3 = arith.constant 0 : index
    %c0_4 = arith.constant 0 : index
    %1 = vector.load %arg1[%c0_2, %c0_3, %c0_4] : memref<2x8x32xf32, #tpu.memory_space<vmem>>, vector<2x8x32xf32>
    %2 = vector.broadcast %0 : vector<1x1x32xf32> to vector<2x8x32xf32>
    %3 = arith.mulf %1, %2 : vector<2x8x32xf32>
    %cst = arith.constant dense<0.000000e+00> : vector<2x8xf32>
    %4 = vector.multi_reduction <add>, %3, %cst [2] : vector<2x8x32xf32> to vector<2x8xf32>
    %c0_5 = arith.constant 0 : index
    %c0_6 = arith.constant 0 : index
    %5 = vector.load %arg3[%c0_5, %c0_6] : memref<1x8xf32, #tpu.memory_space<vmem>>, vector<1x8xf32>
    %6 = vector.broadcast %5 : vector<1x8xf32> to vector<2x8xf32>
    %7 = arith.addf %4, %6 : vector<2x8xf32>
    %8 = math.tanh %7 : vector<2x8xf32>
    %9 = math.exp %8 : vector<2x8xf32>
    %c0_7 = arith.constant 0 : index
    %c0_8 = arith.constant 0 : index
    %10 = vector.load %arg4[%c0_7, %c0_8] : memref<2x8xf32, #tpu.memory_space<vmem>>, vector<2x8xf32>
    %11 = arith.mulf %9, %10 : vector<2x8xf32>
    %cst_9 = arith.constant dense<0.000000e+00> : vector<2xf32>
    %12 = vector.multi_reduction <add>, %11, %cst_9 [1] : vector<2x8xf32> to vector<2xf32>
    %13 = vector.shape_cast %12 : vector<2xf32> to vector<2x1xf32>
    %14 = vector.broadcast %13 : vector<2x1xf32> to vector<2x8xf32>
    %15 = arith.divf %11, %14 : vector<2x8xf32>
    %cst_10 = arith.constant 1.000000e-10 : f32
    %16 = vector.broadcast %cst_10 : f32 to vector<2x8xf32>
    %17 = arith.addf %15, %16 : vector<2x8xf32>
    %c0_11 = arith.constant 0 : index
    %c0_12 = arith.constant 0 : index
    %c0_13 = arith.constant 0 : index
    %18 = vector.load %arg1[%c0_11, %c0_12, %c0_13] : memref<2x8x32xf32, #tpu.memory_space<vmem>>, vector<2x8x32xf32>
    %19 = vector.shape_cast %17 : vector<2x8xf32> to vector<2x8x1xf32>
    %20 = vector.broadcast %19 : vector<2x8x1xf32> to vector<2x8x32xf32>
    %21 = arith.mulf %18, %20 : vector<2x8x32xf32>
    %cst_14 = arith.constant dense<0.000000e+00> : vector<2x32xf32>
    %22 = vector.multi_reduction <add>, %21, %cst_14 [1] : vector<2x8x32xf32> to vector<2x32xf32>
    %c0_15 = arith.constant 0 : index
    %c0_16 = arith.constant 0 : index
    %23 = vector.load %arg5[%c0_15, %c0_16] : memref<2x32xf32, #tpu.memory_space<vmem>>, vector<2x32xf32>
    tpu.vector_store %arg5[%c0_15, %c0_16], %22 {strides = array<i32>} : memref<2x32xf32, #tpu.memory_space<vmem>>, vector<2x32xf32>,
    return
  }
  func.func @transform_0(%arg0: i32) -> (i32, i32, i32) {
    %c0_i32 = arith.constant 0 : i32
    %c0_i32_0 = arith.constant 0 : i32
    %c0_i32_1 = arith.constant 0 : i32
    return %arg0, %c0_i32, %c0_i32_0 : i32, i32, i32
  }
  func.func @transform_1(%arg0: i32) -> (i32, i32, i32) {
    %c0_i32 = arith.constant 0 : i32
    %c0_i32_0 = arith.constant 0 : i32
    %c0_i32_1 = arith.constant 0 : i32
    %c0_i32_2 = arith.constant 0 : i32
    return %c0_i32, %c0_i32_0, %c0_i32_1 : i32, i32, i32
  }
  func.func @transform_2(%arg0: i32) -> (i32, i32) {
    %c0_i32 = arith.constant 0 : i32
    %c0_i32_0 = arith.constant 0 : i32
    %c0_i32_1 = arith.constant 0 : i32
    return %c0_i32, %c0_i32_0 : i32, i32
  }
  func.func @transform_3(%arg0: i32) -> (i32, i32) {
    %c0_i32 = arith.constant 0 : i32
    %c0_i32_0 = arith.constant 0 : i32
    return %arg0, %c0_i32 : i32, i32
  }
  func.func @transform_4(%arg0: i32) -> (i32, i32) {
    %c0_i32 = arith.constant 0 : i32
    %c0_i32_0 = arith.constant 0 : i32
    return %arg0, %c0_i32 : i32, i32
  }
}

</mosaic_0001>

<llo_original>
// kernel: tpu_custom_call.1
$region0: #{tpu_custom_call.1}
  #allocation0 [shape = 'u32[]', space=smem, size = 0x4, offset = 0x4, fixed_abs, tag = 'smem constant byte address 0x4 - core index']
  #allocation1 [shape = 'u32[144,128]{1,0:T(1,128)}', space=vmem, size = 0x12000, scoped, tag = 'internal scratch']
  %s0 = inlined_call_operand.hbm [shape: f32[2,8,32], index: 0, kind: input, shape index: {}]
  %s1 = inlined_call_operand.vmem [shape: f32[1,1,32], index: 1, kind: input, shape index: {}]
  %s2 = inlined_call_operand.hbm [shape: f32[1,8], index: 2, kind: input, shape index: {}]
  %s3 = inlined_call_operand.vmem [shape: f32[2,8], index: 3, kind: input, shape index: {}]
  %s4 = inlined_call_operand.hbm [shape: f32[2,32], index: 4, kind: output, shape index: {}]
  %s5 = sld [smem:[#allocation0]]
  $region34: #{tpu_custom_call.1} parent=0
    _
  %s7 = ssub.s32 1, %s5
  %s8 = scalar_select 0, %s7, %s5
  $region1: #{tpu_custom_call.1} parent=0
    #allocation2 [shape = 'u8[8192]{0}', space=vmem, size = 0x2000, scoped, tag = 'input window, operand 0, single buffered']
    #allocation3 [shape = 's32[1]{0}', space=sflag, size = 0x4, scoped, tag = 'scoped memory for tpu_custom_call.1']
    #allocation4 [shape = 's32[1]{0}', space=sflag, size = 0x4, scoped, tag = 'scoped memory for tpu_custom_call.1']
    #allocation5 [shape = 'u8[512]{0}', space=vmem, size = 0x400, scoped, tag = 'input window, operand 2, single buffered']
    #allocation6 [shape = 's32[1]{0}', space=sflag, size = 0x4, scoped, tag = 'scoped memory for tpu_custom_call.1']
    #allocation7 [shape = 'u8[1024]{0}', space=vmem, size = 0x400, scoped, tag = 'output window, operand 0, single buffered']
    %9 = vsyncpa [#allocation3], 0
    %10 = vsyncpa [#allocation6], 0
    %11 = vsyncpa [#allocation4], 0
    // Predicated region
    $region2: #{tpu_custom_call.1} parent=1 // pred_check
      _
    $region3: #{tpu_custom_call.1} parent=1 // pred_check_branch
      %13 = sbr.rel (0) target = $region5
    $region4: #{tpu_custom_call.1} parent=1 // pred_region
      %s15 = ssub.s32 256, 256
      %16 = vsyncadd [#allocation3], %s15
      %s17 = sshll.u32 [#allocation2], 4
      %s18 = int_to_ptr.vmem [resolvable:$true] %s17
      %23 = dma.hbm_to_vmem [thread:$0]  %s0, 256, %s18, [#allocation3], 128, 128, 8
    $region5: #{tpu_custom_call.1} parent=1 // pred_fallthru
      _
    // Predicated region
    $region6: #{tpu_custom_call.1} parent=1 // pred_check
      _
    $region7: #{tpu_custom_call.1} parent=1 // pred_check_branch
      %25 = sbr.rel (0) target = $region9
    $region8: #{tpu_custom_call.1} parent=1 // pred_region
      _
    $region9: #{tpu_custom_call.1} parent=1 // pred_fallthru
      _
    // Predicated region
    $region10: #{tpu_custom_call.1} parent=1 // pred_check
      _
    $region11: #{tpu_custom_call.1} parent=1 // pred_check_branch
      %27 = sbr.rel (0) target = $region13
    $region12: #{tpu_custom_call.1} parent=1 // pred_region
      %s29 = ssub.s32 16, 16
      %30 = vsyncadd [#allocation6], %s29
      %s32 = sshll.u32 [#allocation5], 4
      %s33 = int_to_ptr.vmem [resolvable:$true] %s32
      %35 = dma.hbm_to_vmem [thread:$0]  %s2, 16, %s33, [#allocation6]
    $region13: #{tpu_custom_call.1} parent=1 // pred_fallthru
      _
    // Predicated region
    $region14: #{tpu_custom_call.1} parent=1 // pred_check
      _
    $region15: #{tpu_custom_call.1} parent=1 // pred_check_branch
      %37 = sbr.rel (0) target = $region17
    $region16: #{tpu_custom_call.1} parent=1 // pred_region
      _
    $region17: #{tpu_custom_call.1} parent=1 // pred_fallthru
      _
    // Predicated region
    $region18: #{tpu_custom_call.1} parent=1 // pred_check
      _
    $region19: #{tpu_custom_call.1} parent=1 // pred_check_branch
      %39 = sbr.rel (0) target = $region21
    $region20: #{tpu_custom_call.1} parent=1 // pred_region
      %40 = dma.done [#allocation3], 256
    $region21: #{tpu_custom_call.1} parent=1 // pred_fallthru
      _
    // Predicated region
    $region22: #{tpu_custom_call.1} parent=1 // pred_check
      _
    $region23: #{tpu_custom_call.1} parent=1 // pred_check_branch
      %42 = sbr.rel (0) target = $region25
    $region24: #{tpu_custom_call.1} parent=1 // pred_region
      %43 = dma.done [#allocation6], 16
    $region25: #{tpu_custom_call.1} parent=1 // pred_fallthru
      _
    %v44 = vld [vmem:[%s1] sm:$0x1]
    %v45 = vld [vmem:[#allocation2] sm:$0xff]
    %v46 = vld [vmem:[#allocation2 + $0x8] sm:$0xff]
    %v48 = vlaneseq
    %v49 = vshrl.u32 %v48, 7
    %v50 = vsub.s32 0, %v49
    %v51 = vrot.slane %v44, %v50
    %v53 = vmul.f32 %v45, %v51
    %v54 = vmul.f32 %v46, %v51
    %vm55 = vcmask 261120
    %v56 = vsel %vm55, %v53, 0.0
    %57 = vadd.xlane.f32.xlu0 %v56
    %v58 = vpop.xlane.xlu0 %57
    %v59 = vsel %vm55, %v54, 0.0
    %60 = vadd.xlane.f32.xlu0 %v59
    %v61 = vpop.xlane.xlu0 %60
    %v62 = vld [vmem:[#allocation5] sm:$0x1]
    %v64 = vlaneseq
    %v65 = vshrl.u32 %v64, 7
    %v66 = vsub.s32 0, %v65
    %v67 = vrot.slane %v62, %v66
    %69 = vbcast.lane.b32.xlu0 %v67, 256
    %v70 = vpop.permute.xlu0 %69
    %v72 = vadd.f32 %v58, %v70
    %v73 = vadd.f32 %v61, %v70
    %v74 = vtanh.pop %v72
    %v75 = vtanh.pop %v73
    %v76 = vmul.f32 %v74, 1.442695
    %v77 = vpow.pop %v76
    %v78 = vmul.f32 %v75, 1.442695
    %v79 = vpow.pop %v78
    %v80 = vld [vmem:[%s3] sm:$0x3]
    %v82 = vlaneseq
    %v83 = vshrl.u32 %v82, 7
    %v84 = vsub.s32 0, %v83
    %v85 = vrot.slane %v80, %v84
    %87 = vbcast.lane.b32.xlu0 %v85, 256
    %v88 = vpop.permute.xlu0 %87
    %v89 = vlaneseq
    %v90 = vshrl.u32 %v89, 7
    %v91 = vsub.s32 1, %v90
    %v92 = vrot.slane %v80, %v91
    %94 = vbcast.lane.b32.xlu0 %v92, 256
    %v95 = vpop.permute.xlu0 %94
    %v98 = vmul.f32 %v77, %v88
    %v99 = vmul.f32 %v79, %v95
    %102 = vset.pattern.permute.xlu0 0
    %103 = vperm.xlu0 %102, %v98
    %v104 = vpop.permute.xlu0 %103
    %105 = vset.pattern.permute.xlu0 0
    %106 = vperm.xlu0 %105, %v99
    %v107 = vpop.permute.xlu0 %106
    %v108 = vlaneseq
    %v109 = vand.u32 %v108, 127
    %v110 = vlaneseq
    %v111 = vshrl.u32 %v110, 7
    %v112 = vsub.s32 %v109, %v111
    %v113 = vrot.slane %v104, %v112
    %v114 = vlaneseq
    %v115 = vshrl.u32 %v114, 7
    %v116 = vsub.s32 %v109, %v115
    %v117 = vrot.slane %v107, %v116
    %vm118 = vcmask 1041409
    %v119 = vsel %vm118, %v117, %v113
    %vm121 = vcmask 58368
    %v122 = vsel %vm121, %v119, 0.0
    %123 = vadd.xlane.f32.xlu0 %v122
    %v124 = vpop.xlane.xlu0 %123
    %v126 = vlaneseq
    %v127 = vshrl.u32 %v126, 7
    %v128 = vsub.s32 0, %v127
    %v129 = vrot.slane %v124, %v128
    %v130 = vlaneseq
    %v131 = vshrl.u32 %v130, 7
    %v132 = vsub.s32 1, %v131
    %v133 = vrot.slane %v124, %v132
    %v136 = vrcp.pop %v129
    %v137 = vmul.f32 %v98, %v136
    %v138 = vrcp.pop %v133
    %v139 = vmul.f32 %v99, %v138
    %v140 = vadd.f32 %v137, 1e-10
    %v141 = vadd.f32 %v139, 1e-10
    %143 = vset.pattern.permute.xlu0 0
    %144 = vperm.xlu0 %143, %v140
    %v145 = vpop.permute.xlu0 %144
    %148 = vset.pattern.permute.xlu0 0
    %149 = vperm.xlu0 %148, %v141
    %v150 = vpop.permute.xlu0 %149
    %v152 = vmul.f32 %v45, %v145
    %v153 = vmul.f32 %v46, %v150
    %v154 = vsel %vm55, %v152, 0.0
    %v155 = vrot.slane %v154, 4
    %v156 = vadd.f32 %v154, %v155
    %v157 = vrot.slane %v156, 2
    %v158 = vadd.f32 %v156, %v157
    %v159 = vrot.slane %v158, 1
    %v160 = vadd.f32 %v158, %v159
    %v161 = vsel %vm55, %v153, 0.0
    %v162 = vrot.slane %v161, 4
    %v163 = vadd.f32 %v161, %v162
    %v164 = vrot.slane %v163, 2
    %v165 = vadd.f32 %v163, %v164
    %v166 = vrot.slane %v165, 1
    %v167 = vadd.f32 %v165, %v166
    %v170 = vsel %vm118, %v167, %v160
    %vm172 = vcmask 254976
    %173 = vst.msk [vmem:[#allocation7] sm:$0x3] %vm172, %v170
    // Predicated region
    $region26: #{tpu_custom_call.1} parent=1 // pred_check
      _
    $region27: #{tpu_custom_call.1} parent=1 // pred_check_branch
      %175 = sbr.rel (0) target = $region29
    $region28: #{tpu_custom_call.1} parent=1 // pred_region
      %s177 = ssub.s32 32, 32
      %178 = vsyncadd [#allocation4], %s177
      %s180 = sshll.u32 [#allocation7], 4
      %s181 = int_to_ptr.vmem [resolvable:$true] %s180
      %183 = dma.vmem_to_hbm [thread:$0]  %s181, 32, %s4, [#allocation4]
    $region29: #{tpu_custom_call.1} parent=1 // pred_fallthru
      _
    // Predicated region
    $region30: #{tpu_custom_call.1} parent=1 // pred_check
      _
    $region31: #{tpu_custom_call.1} parent=1 // pred_check_branch
      %185 = sbr.rel (0) target = $region33
    $region32: #{tpu_custom_call.1} parent=1 // pred_region
      %186 = dma.done [#allocation4], 32
    $region33: #{tpu_custom_call.1} parent=1 // pred_fallthru
      _
    %187 = vsyncpa [#allocation3], 1
    %188 = vsyncpa [#allocation6], 1
    %189 = vsyncpa [#allocation4], 1

</llo_original>
